<compile_context>
chip_gen: v7x
topology: tpu7x:2x2x1
jax: 0.10.0
libtpu: 0.0.40
codegen_flags: <defaults>
</compile_context>

<pallas_src>
import jax
import jax.numpy as jnp
from jax.experimental import pallas as pl
from jax.experimental.pallas import tpu as pltpu


def _make_mtl_kernel(total_rows, block_rows, feat):
    """Build the streaming-reduction kernel for fixed static shapes."""
    inv_n = 1.0 / float(total_rows * feat)
    ragged = (total_rows % block_rows) != 0

    def kernel(log_vars_ref, op_ref, oy_ref, lp_ref, ly_ref, out_ref,
               bce_acc, sq_acc):
        pid = pl.program_id(0)

        @pl.when(pid == 0)
        def _init():
            bce_acc[...] = jnp.zeros_like(bce_acc)
            sq_acc[...] = jnp.zeros_like(sq_acc)

        # Upcast inside the kernel (mandatory on v5e; allows bf16 HBM inputs).
        p = op_ref[...].astype(jnp.float32)
        y = oy_ref[...].astype(jnp.float32)
        d = lp_ref[...].astype(jnp.float32) - ly_ref[...].astype(jnp.float32)

        if ragged:
            row = (jax.lax.broadcasted_iota(jnp.int32, (block_rows, feat), 0)
                   + pid * block_rows)
            valid = row < total_rows
            # Sanitize padded rows so log() never sees garbage / NaNs.
            p = jnp.where(valid, p, 0.5)
            y = jnp.where(valid, y, 0.0)
            d = jnp.where(valid, d, 0.0)

        # ---- BCE (sum), matching torch.nn.BCELoss (log clamped at -100) ----
        log_p = jnp.maximum(jnp.log(p), -100.0)
        log_1mp = jnp.maximum(jnp.log(1.0 - p), -100.0)
        bce_elem = log_1mp + y * (log_p - log_1mp)
        if ragged:
            bce_elem = jnp.where(valid, bce_elem, 0.0)

        bce_acc[...] += jnp.sum(bce_elem, keepdims=True)
        # ---- MSE (sum) ----
        sq_acc[...] += jnp.sum(d * d, keepdims=True)

        @pl.when(pid == pl.num_programs(0) - 1)
        def _finalize():
            bce = -bce_acc[...] * inv_n           # (1,1)
            mse = sq_acc[...] * inv_n             # (1,1)
            lv0 = log_vars_ref[0]
            lv1 = log_vars_ref[1]
            total = (jnp.exp(-lv0) * bce + lv0) + (jnp.exp(-lv1) * mse + lv1)
            out_ref[0, 0] = total[0, 0]

    return kernel


def weight_uncertainty_mtl(log_vars, outcome_pred, outcome, los_pred, los,
                           *, block_rows=None):
    """Pallas implementation of WeightUncertaintyMTL.forward. Returns a scalar."""
    assert outcome_pred.shape == outcome.shape == los_pred.shape == los.shape
    assert outcome_pred.ndim == 2, "expects 2-D (batch, feature) inputs"
    B, F = outcome_pred.shape

    # ---- tile-size selection: ~2 MiB per input block => <=16 MiB double-buffered,
    #      safe under v5e's 16 MiB default and v7x's 32 MiB scoped budgets. ----
    if block_rows is None:
        cap = max(8, (2 * 1024 * 1024) // (F * 4))
        block_rows = min(B, cap)
    if B >= 8:
        block_rows = max(8, (min(block_rows, B) // 8) * 8)  # sublane-aligned
    else:
        block_rows = B  # block equals full batch dim (allowed)
    grid = (pl.cdiv(B, block_rows),)

    kernel = _make_mtl_kernel(B, block_rows, F)

    itemsize = max(outcome_pred.dtype.itemsize, outcome.dtype.itemsize,
                   los_pred.dtype.itemsize, los.dtype.itemsize)
    cost = pl.CostEstimate(
        flops=10 * B * F,
        transcendentals=2 * B * F + 2,
        bytes_accessed=4 * B * F * itemsize + int(log_vars.size) * 4 + 4,
    )

    def tile_spec():
        return pl.BlockSpec((block_rows, F), lambda i: (i, 0))

    out = pl.pallas_call(
        kernel,
        out_shape=jax.ShapeDtypeStruct((1, 1), jnp.float32),
        grid=grid,
        in_specs=[
            pl.BlockSpec(memory_space=pltpu.MemorySpace.SMEM),   # log_vars
            tile_spec(),                                         # outcome_pred
            tile_spec(),                                         # outcome
            tile_spec(),                                         # los_pred
            tile_spec(),                                         # los
        ],
        out_specs=pl.BlockSpec(memory_space=pltpu.MemorySpace.SMEM),
        scratch_shapes=[pltpu.VMEM((1, 1), jnp.float32),   # bce sum accumulator
                        pltpu.VMEM((1, 1), jnp.float32)],  # sq-err sum accumulator
        compiler_params=pltpu.CompilerParams(
            dimension_semantics=("arbitrary",),       # carried accumulators
            vmem_limit_bytes=32 * 1024 * 1024),
        cost_estimate=cost,
    )(log_vars, outcome_pred, outcome, los_pred, los)
    return out[0, 0]


def _reference(log_vars, outcome_pred, outcome, los_pred, los):
    """Pure-JAX reference mirroring the PyTorch forward."""
    log_p = jnp.maximum(jnp.log(outcome_pred), -100.0)
    log_1mp = jnp.maximum(jnp.log(1.0 - outcome_pred), -100.0)
    bce = -jnp.mean(outcome * log_p + (1.0 - outcome) * log_1mp)
    mse = jnp.mean((los_pred - los) ** 2)
    loss0 = jnp.exp(-log_vars[0]) * bce + log_vars[0]
    loss1 = jnp.exp(-log_vars[1]) * mse + log_vars[1]
    return loss0 + loss1


if __name__ == "__main__":
    task_num = 2
    # nn.Parameter(torch.zeros(task_num)) -> deterministic zero init
    log_vars = jnp.zeros((task_num,), dtype=jnp.float32)

    key = jax.random.PRNGKey(0)
    k1, k2, k3, k4 = jax.random.split(key, 4)
    # B=20, block_rows=8 -> 3-step grid with a ragged (masked) last block,
    # exercising the accumulate/finalize + masking paths.
    B, F = 20, 128
    outcome_pred = jax.nn.sigmoid(jax.random.normal(k1, (B, F), jnp.float32))
    outcome = (jax.random.uniform(k2, (B, F), jnp.float32) > 0.5).astype(jnp.float32)
    los_pred = jax.random.normal(k3, (B, F), jnp.float32)
    los = jax.random.normal(k4, (B, F), jnp.float32)

    result = weight_uncertainty_mtl(log_vars, outcome_pred, outcome,
                                    los_pred, los, block_rows=8)
    jax.block_until_ready(result)

    ref = _reference(log_vars, outcome_pred, outcome, los_pred, los)
    assert jnp.allclose(result, ref, rtol=1e-5, atol=1e-5), (result, ref)
    print("KERNEL_OK")
</pallas_src>

<mosaic_0001>
module attributes {stable_mosaic.version = 11 : i64} {
  func.func @kernel(%arg0: i32, %arg1: memref<2xf32, #tpu.memory_space<smem>>, %arg2: memref<8x128xf32, #tpu.memory_space<vmem>>, %arg3: memref<8x128xf32, #tpu.memory_space<vmem>>, %arg4: memref<8x128xf32, #tpu.memory_space<vmem>>, %arg5: memref<8x128xf32, #tpu.memory_space<vmem>>, %arg6: memref<1x1xf32, #tpu.memory_space<smem>>, %arg7: memref<1x1xf32, #tpu.memory_space<vmem>>, %arg8: memref<1x1xf32, #tpu.memory_space<vmem>>) attributes {dimension_semantics = [#tpu.dimension_semantics<arbitrary>], iteration_bounds = array<i64: 3>, scalar_prefetch = 0 : i64, scratch_operands = 2 : i64, tpu.core_type = #tpu.core_type<tc>, window_params = [{transform_indices = @transform_0, window_bounds = array<i64: 2>}, {transform_indices = @transform_1, window_bounds = array<i64: 8, 128>}, {transform_indices = @transform_2, window_bounds = array<i64: 8, 128>}, {transform_indices = @transform_3, window_bounds = array<i64: 8, 128>}, {transform_indices = @transform_4, window_bounds = array<i64: 8, 128>}, {transform_indices = @transform_5, window_bounds = array<i64: 1, 1>}]} {
    %c0_i32 = arith.constant 0 : i32
    %0 = arith.cmpi eq, %arg0, %c0_i32 : i32
    %1 = arith.extui %0 : i1 to i32
    %c0_i32_0 = arith.constant 0 : i32
    %2 = arith.cmpi ne, %1, %c0_i32_0 : i32
    scf.if %2 {
      %cst_25 = arith.constant 0.000000e+00 : f32
      %53 = vector.broadcast %cst_25 : f32 to vector<1x1xf32>
      %c0_26 = arith.constant 0 : index
      %c0_27 = arith.constant 0 : index
      %54 = vector.load %arg7[%c0_26, %c0_27] : memref<1x1xf32, #tpu.memory_space<vmem>>, vector<1x1xf32>
      tpu.vector_store %arg7[%c0_26, %c0_27], %53 {strides = array<i32>} : memref<1x1xf32, #tpu.memory_space<vmem>>, vector<1x1xf32>,
      %cst_28 = arith.constant 0.000000e+00 : f32
      %55 = vector.broadcast %cst_28 : f32 to vector<1x1xf32>
      %c0_29 = arith.constant 0 : index
      %c0_30 = arith.constant 0 : index
      %56 = vector.load %arg8[%c0_29, %c0_30] : memref<1x1xf32, #tpu.memory_space<vmem>>, vector<1x1xf32>
      tpu.vector_store %arg8[%c0_29, %c0_30], %55 {strides = array<i32>} : memref<1x1xf32, #tpu.memory_space<vmem>>, vector<1x1xf32>,
    } else {
    }
    %c0 = arith.constant 0 : index
    %c0_1 = arith.constant 0 : index
    %3 = vector.load %arg2[%c0, %c0_1] : memref<8x128xf32, #tpu.memory_space<vmem>>, vector<8x128xf32>
    %c0_2 = arith.constant 0 : index
    %c0_3 = arith.constant 0 : index
    %4 = vector.load %arg3[%c0_2, %c0_3] : memref<8x128xf32, #tpu.memory_space<vmem>>, vector<8x128xf32>
    %c0_4 = arith.constant 0 : index
    %c0_5 = arith.constant 0 : index
    %5 = vector.load %arg4[%c0_4, %c0_5] : memref<8x128xf32, #tpu.memory_space<vmem>>, vector<8x128xf32>
    %c0_6 = arith.constant 0 : index
    %c0_7 = arith.constant 0 : index
    %6 = vector.load %arg5[%c0_6, %c0_7] : memref<8x128xf32, #tpu.memory_space<vmem>>, vector<8x128xf32>
    %7 = arith.subf %5, %6 : vector<8x128xf32>
    %8 = tpu.iota {dimensions = array<i32: 0>} : vector<8x128xi32>
    %c8_i32 = arith.constant 8 : i32
    %9 = arith.muli %arg0, %c8_i32 : i32
    %10 = vector.broadcast %9 : i32 to vector<8x128xi32>
    %11 = arith.addi %8, %10 : vector<8x128xi32>
    %c20_i32 = arith.constant 20 : i32
    %12 = vector.broadcast %c20_i32 : i32 to vector<8x128xi32>
    %13 = arith.cmpi slt, %11, %12 : vector<8x128xi32>
    %cst = arith.constant 5.000000e-01 : f32
    %14 = vector.broadcast %cst : f32 to vector<8x128xf32>
    %15 = arith.select %13, %3, %14 : vector<8x128xi1>, vector<8x128xf32>
    %cst_8 = arith.constant 0.000000e+00 : f32
    %16 = vector.broadcast %cst_8 : f32 to vector<8x128xf32>
    %17 = arith.select %13, %4, %16 : vector<8x128xi1>, vector<8x128xf32>
    %cst_9 = arith.constant 0.000000e+00 : f32
    %18 = vector.broadcast %cst_9 : f32 to vector<8x128xf32>
    %19 = arith.select %13, %7, %18 : vector<8x128xi1>, vector<8x128xf32>
    %20 = math.log %15 : vector<8x128xf32>
    %cst_10 = arith.constant -1.000000e+02 : f32
    %21 = vector.broadcast %cst_10 : f32 to vector<8x128xf32>
    %22 = arith.maximumf %20, %21 : vector<8x128xf32>
    %cst_11 = arith.constant 1.000000e+00 : f32
    %23 = vector.broadcast %cst_11 : f32 to vector<8x128xf32>
    %24 = arith.subf %23, %15 : vector<8x128xf32>
    %25 = math.log %24 : vector<8x128xf32>
    %cst_12 = arith.constant -1.000000e+02 : f32
    %26 = vector.broadcast %cst_12 : f32 to vector<8x128xf32>
    %27 = arith.maximumf %25, %26 : vector<8x128xf32>
    %28 = arith.subf %22, %27 : vector<8x128xf32>
    %29 = arith.mulf %17, %28 : vector<8x128xf32>
    %30 = arith.addf %27, %29 : vector<8x128xf32>
    %cst_13 = arith.constant 0.000000e+00 : f32
    %31 = vector.broadcast %cst_13 : f32 to vector<8x128xf32>
    %32 = arith.select %13, %30, %31 : vector<8x128xi1>, vector<8x128xf32>
    %c0_14 = arith.constant 0 : index
    %c0_15 = arith.constant 0 : index
    %33 = vector.load %arg7[%c0_14, %c0_15] : memref<1x1xf32, #tpu.memory_space<vmem>>, vector<1x1xf32>
    %34 = vector.shape_cast %32 : vector<8x128xf32> to vector<1x8x128xf32>
    %cst_16 = arith.constant dense<0.000000e+00> : vector<1xf32>
    %35 = vector.multi_reduction <add>, %34, %cst_16 [1, 2] : vector<1x8x128xf32> to vector<1xf32>
    %36 = vector.shape_cast %35 : vector<1xf32> to vector<1x1x1xf32>
    %37 = vector.extract %36[0, 0, 0] : f32 from vector<1x1x1xf32>
    %38 = vector.broadcast %37 : f32 to vector<1x1xf32>
    %39 = arith.addf %33, %38 : vector<1x1xf32>
    %c0_17 = arith.constant 0 : index
    %c0_18 = arith.constant 0 : index
    %40 = vector.load %arg7[%c0_17, %c0_18] : memref<1x1xf32, #tpu.memory_space<vmem>>, vector<1x1xf32>
    tpu.vector_store %arg7[%c0_17, %c0_18], %39 {strides = array<i32>} : memref<1x1xf32, #tpu.memory_space<vmem>>, vector<1x1xf32>,
    %c0_19 = arith.constant 0 : index
    %c0_20 = arith.constant 0 : index
    %41 = vector.load %arg8[%c0_19, %c0_20] : memref<1x1xf32, #tpu.memory_space<vmem>>, vector<1x1xf32>
    %42 = arith.mulf %19, %19 : vector<8x128xf32>
    %43 = vector.shape_cast %42 : vector<8x128xf32> to vector<1x8x128xf32>
    %cst_21 = arith.constant dense<0.000000e+00> : vector<1xf32>
    %44 = vector.multi_reduction <add>, %43, %cst_21 [1, 2] : vector<1x8x128xf32> to vector<1xf32>
    %45 = vector.shape_cast %44 : vector<1xf32> to vector<1x1x1xf32>
    %46 = vector.extract %45[0, 0, 0] : f32 from vector<1x1x1xf32>
    %47 = vector.broadcast %46 : f32 to vector<1x1xf32>
    %48 = arith.addf %41, %47 : vector<1x1xf32>
    %c0_22 = arith.constant 0 : index
    %c0_23 = arith.constant 0 : index
    %49 = vector.load %arg8[%c0_22, %c0_23] : memref<1x1xf32, #tpu.memory_space<vmem>>, vector<1x1xf32>
    tpu.vector_store %arg8[%c0_22, %c0_23], %48 {strides = array<i32>} : memref<1x1xf32, #tpu.memory_space<vmem>>, vector<1x1xf32>,
    %c2_i32 = arith.constant 2 : i32
    %50 = arith.cmpi eq, %arg0, %c2_i32 : i32
    %51 = arith.extui %50 : i1 to i32
    %c0_i32_24 = arith.constant 0 : i32
    %52 = arith.cmpi ne, %51, %c0_i32_24 : i32
    scf.if %52 {
      %c0_25 = arith.constant 0 : index
      %c0_26 = arith.constant 0 : index
      %53 = vector.load %arg7[%c0_25, %c0_26] : memref<1x1xf32, #tpu.memory_space<vmem>>, vector<1x1xf32>
      %cst_27 = arith.constant 0.000000e+00 : f32
      %54 = vector.broadcast %cst_27 : f32 to vector<1x1xf32>
      %55 = arith.subf %54, %53 : vector<1x1xf32>
      %cst_28 = arith.constant 3.906250e-04 : f32
      %56 = vector.broadcast %cst_28 : f32 to vector<1x1xf32>
      %57 = arith.mulf %55, %56 : vector<1x1xf32>
      %c0_29 = arith.constant 0 : index
      %c0_30 = arith.constant 0 : index
      %58 = vector.load %arg8[%c0_29, %c0_30] : memref<1x1xf32, #tpu.memory_space<vmem>>, vector<1x1xf32>
      %cst_31 = arith.constant 3.906250e-04 : f32
      %59 = vector.broadcast %cst_31 : f32 to vector<1x1xf32>
      %60 = arith.mulf %58, %59 : vector<1x1xf32>
      %c0_32 = arith.constant 0 : index
      %61 = memref.load %arg1[%c0_32] : memref<2xf32, #tpu.memory_space<smem>>
      %c1 = arith.constant 1 : index
      %62 = memref.load %arg1[%c1] : memref<2xf32, #tpu.memory_space<smem>>
      %cst_33 = arith.constant 0.000000e+00 : f32
      %63 = arith.subf %cst_33, %61 : f32
      %64 = math.exp %63 : f32
      %65 = vector.broadcast %64 : f32 to vector<1x1xf32>
      %66 = arith.mulf %65, %57 : vector<1x1xf32>
      %67 = vector.broadcast %61 : f32 to vector<1x1xf32>
      %68 = arith.addf %66, %67 : vector<1x1xf32>
      %cst_34 = arith.constant 0.000000e+00 : f32
      %69 = arith.subf %cst_34, %62 : f32
      %70 = math.exp %69 : f32
      %71 = vector.broadcast %70 : f32 to vector<1x1xf32>
      %72 = arith.mulf %71, %60 : vector<1x1xf32>
      %73 = vector.broadcast %62 : f32 to vector<1x1xf32>
      %74 = arith.addf %72, %73 : vector<1x1xf32>
      %75 = arith.addf %68, %74 : vector<1x1xf32>
      %76 = vector.extract %75[0, 0] : f32 from vector<1x1xf32>
      %c0_35 = arith.constant 0 : index
      %c0_36 = arith.constant 0 : index
      %77 = memref.load %arg6[%c0_35, %c0_36] : memref<1x1xf32, #tpu.memory_space<smem>>
      memref.store %76, %arg6[%c0_35, %c0_36] : memref<1x1xf32, #tpu.memory_space<smem>>
    } else {
    }
    return
  }
  func.func @transform_0(%arg0: i32) -> i32 {
    %c0_i32 = arith.constant 0 : i32
    %c0_i32_0 = arith.constant 0 : i32
    return %c0_i32 : i32
  }
  func.func @transform_1(%arg0: i32) -> (i32, i32) {
    %c0_i32 = arith.constant 0 : i32
    %c0_i32_0 = arith.constant 0 : i32
    return %arg0, %c0_i32 : i32, i32
  }
  func.func @transform_2(%arg0: i32) -> (i32, i32) {
    %c0_i32 = arith.constant 0 : i32
    %c0_i32_0 = arith.constant 0 : i32
    return %arg0, %c0_i32 : i32, i32
  }
  func.func @transform_3(%arg0: i32) -> (i32, i32) {
    %c0_i32 = arith.constant 0 : i32
    %c0_i32_0 = arith.constant 0 : i32
    return %arg0, %c0_i32 : i32, i32
  }
  func.func @transform_4(%arg0: i32) -> (i32, i32) {
    %c0_i32 = arith.constant 0 : i32
    %c0_i32_0 = arith.constant 0 : i32
    return %arg0, %c0_i32 : i32, i32
  }
  func.func @transform_5(%arg0: i32) -> (i32, i32) {
    %c0_i32 = arith.constant 0 : i32
    %c0_i32_0 = arith.constant 0 : i32
    %c0_i32_1 = arith.constant 0 : i32
    return %c0_i32, %c0_i32_0 : i32, i32
  }
}

</mosaic_0001>

<llo_original>
// kernel: tpu_custom_call.1
$region0: #{tpu_custom_call.1}
  #allocation0 [shape = 'u32[]', space=smem, size = 0x4, offset = 0x4, fixed_abs, tag = 'smem constant byte address 0x4 - core index']
  #allocation1 [shape = 'u32[144,128]{1,0:T(1,128)}', space=vmem, size = 0x12000, scoped, tag = 'internal scratch']
  #allocation2 [shape = 'f32[1,1]{1,0:T(1,128)}', space=vmem, size = 0x200, scoped, tag = 'scratch operand']
  #allocation3 [shape = 'f32[1,1]{1,0:T(1,128)}', space=vmem, size = 0x200, scoped, tag = 'scratch operand']
  %s0 = inlined_call_operand.hbm [shape: f32[2], index: 0, kind: input, shape index: {}]
  %s1 = inlined_call_operand.hbm [shape: f32[20,128], index: 1, kind: input, shape index: {}]
  %s2 = inlined_call_operand.hbm [shape: f32[20,128], index: 2, kind: input, shape index: {}]
  %s3 = inlined_call_operand.hbm [shape: f32[20,128], index: 3, kind: input, shape index: {}]
  %s4 = inlined_call_operand.hbm [shape: f32[20,128], index: 4, kind: input, shape index: {}]
  %s5 = inlined_call_operand.hbm [shape: f32[1,1], index: 5, kind: output, shape index: {}]
  %s6 = sld [smem:[#allocation0]]
  $region81: #{tpu_custom_call.1} parent=0
    _
  %s8 = ssub.s32 1, %s6
  %s9 = scalar_select 0, %s8, %s6
  $region1: #{tpu_custom_call.1} parent=0
    #allocation4 [shape = 'u8[512]{0}', space=smem, size = 0x200, scoped, tag = 'input window, operand 0, single buffered']
    #allocation5 [shape = 's32[2]{0}', space=sflag, size = 0x8, scoped, tag = 'scoped memory for tpu_custom_call.1']
    #allocation6 [shape = 's32[2]{0}', space=sflag, size = 0x8, scoped, tag = 'scoped memory for tpu_custom_call.1']
    #allocation7 [shape = 's32[2]{0}', space=sflag, size = 0x8, scoped, tag = 'scoped memory for tpu_custom_call.1']
    #allocation8 [shape = 'u8[8192]{0}', space=vmem, size = 0x2000, scoped, tag = 'input window, operand 1']
    #allocation9 [shape = 'u8[8192]{0}', space=vmem, size = 0x2000, scoped, tag = 'input window, operand 2']
    #allocation10 [shape = 's32[2]{0}', space=sflag, size = 0x8, scoped, tag = 'scoped memory for tpu_custom_call.1']
    #allocation11 [shape = 'u8[8192]{0}', space=vmem, size = 0x2000, scoped, tag = 'input window, operand 3']
    #allocation12 [shape = 'u8[8192]{0}', space=vmem, size = 0x2000, scoped, tag = 'input window, operand 4']
    #allocation13 [shape = 's32[2]{0}', space=sflag, size = 0x8, scoped, tag = 'scoped memory for tpu_custom_call.1']
    #allocation14 [shape = 'u8[512]{0}', space=smem, size = 0x200, scoped, tag = 'output window, operand 0, single buffered']
    %10 = vsyncpa [#allocation6], 0
    %11 = vsyncpa [#allocation5], 0
    %s12 = scalar_lea.sflag [#allocation5], 1
    %13 = vsyncpa %s12, 0
    %14 = vsyncpa [#allocation10], 0
    %s15 = scalar_lea.sflag [#allocation10], 1
    %16 = vsyncpa %s15, 0
    %17 = vsyncpa [#allocation13], 0
    %s18 = scalar_lea.sflag [#allocation13], 1
    %19 = vsyncpa %s18, 0
    %20 = vsyncpa [#allocation7], 0
    loop: start=0, step=1, limit=5
    $region2: #{tpu_custom_call.1} parent=1 // loop_pre_header
      _
    $region3: #{tpu_custom_call.1} parent=1 // loop_header
      %s22 = sphi 0, %s26
      %p23 = scmp.ge.s32.totalorder %s22, 5
      %s30 = sphi 0, %s30
      %s32 = sphi 0, %s30
      %s33 = sphi 0, %s32
      %s47 = sphi 0, %s33
      %s53 = sphi 0, %s55
      %s56 = sphi 0, %s53
      %s57 = sphi 0, %s56
      %s73 = sphi 0, %s57
      %s79 = sphi 0, %s81
      %s82 = sphi 0, %s79
      %s83 = sphi 0, %s82
      %s99 = sphi 0, %s83
      %s105 = sphi 0, %s107
      %s108 = sphi 0, %s105
      %s109 = sphi 0, %s108
      %s125 = sphi 0, %s109
      %s131 = sphi 0, %s133
      %s134 = sphi 0, %s131
      %s135 = sphi 0, %s134
      %s151 = sphi 0, %s135
      %s155 = sphi 0, %s155
      %s157 = sphi 0, %s155
      %s158 = sphi 0, %s157
      %s172 = sphi 0, %s158
    $region4: #{tpu_custom_call.1} parent=1 // loop_header_branch
      %25 = sbr.rel (%p23) target = $region8
    $region5: #{tpu_custom_call.1} parent=1 // loop_body
      %s27 = ssub.s32 %s22, 1
      %s28 = ssub.s32 %s22, 2
      %s29 = sadd.s32 %s22, 1
      %s31 = sadd.s32 %s30, 1
      %p34 = scmp.eq.s32.totalorder %s22, 2
      %p35 = scmp.ne.s32.totalorder %s30, %s32
      %p36 = scmp.eq.s32.totalorder %s22, 0
      %p37 = por %p35, %p36
      %p38 = scmp.ne.s32.totalorder %s30, %s32
      %p39 = scmp.eq.s32.totalorder %s27, 2
      %p40 = por %p38, %p39
      %p41 = scmp.ne.s32.totalorder %s32, %s33
      %p42 = scmp.eq.s32.totalorder %s27, 0
      %p43 = por %p41, %p42
      %p44 = scmp.ne.s32.totalorder %s32, %s33
      %p45 = scmp.eq.s32.totalorder %s28, 2
      %p46 = por %p44, %p45
      %p48 = scmp.ne.s32.totalorder %s33, %s47
      %p49 = scmp.eq.s32.totalorder %s28, 0
      %p50 = por %p48, %p49
      %s51 = ssub.s32 %s22, %s29
      %p52 = scmp.eq.s32.totalorder %s51, 0
      %s54 = sadd.s32 %s53, 1
      %s55 = scalar_select %p52, %s53, %s54
      %p58 = pneg %p52
      %p59 = scmp.eq.s32.totalorder %s22, 2
      %p60 = por %p58, %p59
      %p61 = scmp.ne.s32.totalorder %s53, %s56
      %p62 = scmp.eq.s32.totalorder %s22, 0
      %p63 = por %p61, %p62
      %p64 = scmp.ne.s32.totalorder %s53, %s56
      %p65 = scmp.eq.s32.totalorder %s27, 2
      %p66 = por %p64, %p65
      %p67 = scmp.ne.s32.totalorder %s56, %s57
      %p68 = scmp.eq.s32.totalorder %s27, 0
      %p69 = por %p67, %p68
      %p70 = scmp.ne.s32.totalorder %s56, %s57
      %p71 = scmp.eq.s32.totalorder %s28, 2
      %p72 = por %p70, %p71
      %p74 = scmp.ne.s32.totalorder %s57, %s73
      %p75 = scmp.eq.s32.totalorder %s28, 0
      %p76 = por %p74, %p75
      %s77 = ssub.s32 %s22, %s29
      %p78 = scmp.eq.s32.totalorder %s77, 0
      %s80 = sadd.s32 %s79, 1
      %s81 = scalar_select %p78, %s79, %s80
      %p84 = pneg %p78
      %p85 = scmp.eq.s32.totalorder %s22, 2
      %p86 = por %p84, %p85
      %p87 = scmp.ne.s32.totalorder %s79, %s82
      %p88 = scmp.eq.s32.totalorder %s22, 0
      %p89 = por %p87, %p88
      %p90 = scmp.ne.s32.totalorder %s79, %s82
      %p91 = scmp.eq.s32.totalorder %s27, 2
      %p92 = por %p90, %p91
      %p93 = scmp.ne.s32.totalorder %s82, %s83
      %p94 = scmp.eq.s32.totalorder %s27, 0
      %p95 = por %p93, %p94
      %p96 = scmp.ne.s32.totalorder %s82, %s83
      %p97 = scmp.eq.s32.totalorder %s28, 2
      %p98 = por %p96, %p97
      %p100 = scmp.ne.s32.totalorder %s83, %s99
      %p101 = scmp.eq.s32.totalorder %s28, 0
      %p102 = por %p100, %p101
      %s103 = ssub.s32 %s22, %s29
      %p104 = scmp.eq.s32.totalorder %s103, 0
      %s106 = sadd.s32 %s105, 1
      %s107 = scalar_select %p104, %s105, %s106
      %p110 = pneg %p104
      %p111 = scmp.eq.s32.totalorder %s22, 2
      %p112 = por %p110, %p111
      %p113 = scmp.ne.s32.totalorder %s105, %s108
      %p114 = scmp.eq.s32.totalorder %s22, 0
      %p115 = por %p113, %p114
      %p116 = scmp.ne.s32.totalorder %s105, %s108
      %p117 = scmp.eq.s32.totalorder %s27, 2
      %p118 = por %p116, %p117
      %p119 = scmp.ne.s32.totalorder %s108, %s109
      %p120 = scmp.eq.s32.totalorder %s27, 0
      %p121 = por %p119, %p120
      %p122 = scmp.ne.s32.totalorder %s108, %s109
      %p123 = scmp.eq.s32.totalorder %s28, 2
      %p124 = por %p122, %p123
      %p126 = scmp.ne.s32.totalorder %s109, %s125
      %p127 = scmp.eq.s32.totalorder %s28, 0
      %p128 = por %p126, %p127
      %s129 = ssub.s32 %s22, %s29
      %p130 = scmp.eq.s32.totalorder %s129, 0
      %s132 = sadd.s32 %s131, 1
      %s133 = scalar_select %p130, %s131, %s132
      %p136 = pneg %p130
      %p137 = scmp.eq.s32.totalorder %s22, 2
      %p138 = por %p136, %p137
      %p139 = scmp.ne.s32.totalorder %s131, %s134
      %p140 = scmp.eq.s32.totalorder %s22, 0
      %p141 = por %p139, %p140
      %p142 = scmp.ne.s32.totalorder %s131, %s134
      %p143 = scmp.eq.s32.totalorder %s27, 2
      %p144 = por %p142, %p143
      %p145 = scmp.ne.s32.totalorder %s134, %s135
      %p146 = scmp.eq.s32.totalorder %s27, 0
      %p147 = por %p145, %p146
      %p148 = scmp.ne.s32.totalorder %s134, %s135
      %p149 = scmp.eq.s32.totalorder %s28, 2
      %p150 = por %p148, %p149
      %p152 = scmp.ne.s32.totalorder %s135, %s151
      %p153 = scmp.eq.s32.totalorder %s28, 0
      %p154 = por %p152, %p153
      %s156 = sadd.s32 %s155, 1
      %p159 = scmp.eq.s32.totalorder %s22, 2
      %p160 = scmp.ne.s32.totalorder %s155, %s157
      %p161 = scmp.eq.s32.totalorder %s22, 0
      %p162 = por %p160, %p161
      %p163 = scmp.ne.s32.totalorder %s155, %s157
      %p164 = scmp.eq.s32.totalorder %s27, 2
      %p165 = por %p163, %p164
      %p166 = scmp.ne.s32.totalorder %s157, %s158
      %p167 = scmp.eq.s32.totalorder %s27, 0
      %p168 = por %p166, %p167
      %p169 = scmp.ne.s32.totalorder %s157, %s158
      %p170 = scmp.eq.s32.totalorder %s28, 2
      %p171 = por %p169, %p170
      %p173 = scmp.ne.s32.totalorder %s158, %s172
      %p174 = scmp.eq.s32.totalorder %s28, 0
      %p175 = por %p173, %p174
      %p176 = scmp.le.s32.totalorder 1, %s22
      %p177 = scmp.lt.s32.totalorder %s22, 4
      %p178 = pnand %p176, %p177
      %p179 = pneg %p178
      // Predicated region
      $region9: #{tpu_custom_call.1} parent=5 // pred_check
        _
      $region10: #{tpu_custom_call.1} parent=5 // pred_check_branch
        %181 = sbr.rel (%p178) target = $region12
      $region11: #{tpu_custom_call.1} parent=5 // pred_region
        %s182 = ssub.s32 %s22, 1
        // Predicated region
        $region13: #{tpu_custom_call.1} parent=11 // pred_check
          %p183 = pneg %p43
        $region14: #{tpu_custom_call.1} parent=11 // pred_check_branch
          %185 = sbr.rel (%p183) target = $region16
        $region15: #{tpu_custom_call.1} parent=11 // pred_region
          %s187 = ssub.s32 16, 16
          %188 = vsyncadd [#allocation6], %s187
          %191 = dma.hbm_to_smem %s0, 16, [#allocation4], [#allocation6]
        $region16: #{tpu_custom_call.1} parent=11 // pred_fallthru
          _
      $region12: #{tpu_custom_call.1} parent=5 // pred_fallthru
        _
      %p192 = scmp.lt.s32.totalorder %s22, 3
      // Predicated region
      $region17: #{tpu_custom_call.1} parent=5 // pred_check
        %p193 = pneg %p192
      $region18: #{tpu_custom_call.1} parent=5 // pred_check_branch
        %195 = sbr.rel (%p193) target = $region20
      $region19: #{tpu_custom_call.1} parent=5 // pred_region
        // Predicated region
        $region21: #{tpu_custom_call.1} parent=19 // pred_check
          %p196 = pneg %p63
        $region22: #{tpu_custom_call.1} parent=19 // pred_check_branch
          %198 = sbr.rel (%p196) target = $region24
        $region23: #{tpu_custom_call.1} parent=19 // pred_region
          %s199 = sand.u32 %s53, 1
          %s200 = scalar_lea.sflag [#allocation5], %s199
          %s201 = sand.u32 %s53, 1
          %s202 = smul.addr %s201, 8
          %s203 = scalar_lea.vmem [#allocation8], %s202
          %s205 = ssub.s32 128, 128
          %206 = vsyncadd %s200, %s205
          %s207 = smul.addr %s22, 128
          %s208 = scalar_lea.hbm %s1, %s207
          %s210 = sshll.u32 %s203, 4
          %s211 = int_to_ptr.vmem [resolvable:$true] %s210
          %213 = dma.hbm_to_vmem [thread:$0]  %s208, 128, %s211, %s200
        $region24: #{tpu_custom_call.1} parent=19 // pred_fallthru
          _
        // Predicated region
        $region25: #{tpu_custom_call.1} parent=19 // pred_check
          %p214 = pneg %p89
        $region26: #{tpu_custom_call.1} parent=19 // pred_check_branch
          %216 = sbr.rel (%p214) target = $region28
        $region27: #{tpu_custom_call.1} parent=19 // pred_region
          %s217 = sand.u32 %s22, 1
          %s218 = scalar_lea.sflag [#allocation10], %s217
          %s219 = sand.u32 %s79, 1
          %s220 = smul.addr %s219, 8
          %s221 = scalar_lea.vmem [#allocation9], %s220
          %s223 = ssub.s32 128, 128
          %224 = vsyncadd %s218, %s223
          %s225 = smul.addr %s22, 128
          %s226 = scalar_lea.hbm %s2, %s225
          %s228 = sshll.u32 %s221, 4
          %s229 = int_to_ptr.vmem [resolvable:$true] %s228
          %231 = dma.hbm_to_vmem [thread:$0]  %s226, 128, %s229, %s218
        $region28: #{tpu_custom_call.1} parent=19 // pred_fallthru
          _
        // Predicated region
        $region29: #{tpu_custom_call.1} parent=19 // pred_check
          %p232 = pneg %p115
        $region30: #{tpu_custom_call.1} parent=19 // pred_check_branch
          %234 = sbr.rel (%p232) target = $region32
        $region31: #{tpu_custom_call.1} parent=19 // pred_region
          %s235 = sand.u32 %s22, 1
          %s236 = scalar_lea.sflag [#allocation10], %s235
          %s237 = sand.u32 %s105, 1
          %s238 = smul.addr %s237, 8
          %s239 = scalar_lea.vmem [#allocation11], %s238
          %s241 = ssub.s32 128, 128
          %242 = vsyncadd %s236, %s241
          %s243 = smul.addr %s22, 128
          %s244 = scalar_lea.hbm %s3, %s243
          %s246 = sshll.u32 %s239, 4
          %s247 = int_to_ptr.vmem [resolvable:$true] %s246
          %249 = dma.hbm_to_vmem [thread:$0]  %s244, 128, %s247, %s236
        $region32: #{tpu_custom_call.1} parent=19 // pred_fallthru
          _
        // Predicated region
        $region33: #{tpu_custom_call.1} parent=19 // pred_check
          %p250 = pneg %p141
        $region34: #{tpu_custom_call.1} parent=19 // pred_check_branch
          %252 = sbr.rel (%p250) target = $region36
        $region35: #{tpu_custom_call.1} parent=19 // pred_region
          %s253 = sand.u32 %s131, 1
          %s254 = scalar_lea.sflag [#allocation13], %s253
          %s255 = sand.u32 %s131, 1
          %s256 = smul.addr %s255, 8
          %s257 = scalar_lea.vmem [#allocation12], %s256
          %s259 = ssub.s32 128, 128
          %260 = vsyncadd %s254, %s259
          %s261 = smul.addr %s22, 128
          %s262 = scalar_lea.hbm %s4, %s261
          %s264 = sshll.u32 %s257, 4
          %s265 = int_to_ptr.vmem [resolvable:$true] %s264
          %267 = dma.hbm_to_vmem [thread:$0]  %s262, 128, %s265, %s254
        $region36: #{tpu_custom_call.1} parent=19 // pred_fallthru
          _
      $region20: #{tpu_custom_call.1} parent=5 // pred_fallthru
        _
      %p268 = scmp.le.s32.totalorder 1, %s22
      %p269 = scmp.lt.s32.totalorder %s22, 4
      %p270 = pnand %p268, %p269
      %p271 = pneg %p270
      // Predicated region
      $region37: #{tpu_custom_call.1} parent=5 // pred_check
        _
      $region38: #{tpu_custom_call.1} parent=5 // pred_check_branch
        %273 = sbr.rel (%p270) target = $region40
      $region39: #{tpu_custom_call.1} parent=5 // pred_region
        %s274 = ssub.s32 %s22, 1
        // Predicated region
        $region41: #{tpu_custom_call.1} parent=39 // pred_check
          %p275 = pneg %p43
        $region42: #{tpu_custom_call.1} parent=39 // pred_check_branch
          %277 = sbr.rel (%p275) target = $region44
        $region43: #{tpu_custom_call.1} parent=39 // pred_region
          %278 = dma.done [#allocation6], 16
        $region44: #{tpu_custom_call.1} parent=39 // pred_fallthru
          _
        %s279 = sand.u32 %s56, 1
        %s280 = scalar_lea.sflag [#allocation5], %s279
        %s281 = sand.u32 %s56, 1
        %s282 = smul.addr %s281, 8
        %s283 = scalar_lea.vmem [#allocation8], %s282
        // Predicated region
        $region45: #{tpu_custom_call.1} parent=39 // pred_check
          %p284 = pneg %p69
        $region46: #{tpu_custom_call.1} parent=39 // pred_check_branch
          %286 = sbr.rel (%p284) target = $region48
        $region47: #{tpu_custom_call.1} parent=39 // pred_region
          %287 = dma.done %s280, 128
        $region48: #{tpu_custom_call.1} parent=39 // pred_fallthru
          _
        %s288 = sand.u32 %s27, 1
        %s289 = scalar_lea.sflag [#allocation10], %s288
        %s290 = sand.u32 %s82, 1
        %s291 = smul.addr %s290, 8
        %s292 = scalar_lea.vmem [#allocation9], %s291
        // Predicated region
        $region49: #{tpu_custom_call.1} parent=39 // pred_check
          %p293 = pneg %p95
        $region50: #{tpu_custom_call.1} parent=39 // pred_check_branch
          %295 = sbr.rel (%p293) target = $region52
        $region51: #{tpu_custom_call.1} parent=39 // pred_region
          %296 = dma.done %s289, 128
        $region52: #{tpu_custom_call.1} parent=39 // pred_fallthru
          _
        %s297 = sand.u32 %s27, 1
        %s298 = scalar_lea.sflag [#allocation10], %s297
        %s299 = sand.u32 %s108, 1
        %s300 = smul.addr %s299, 8
        %s301 = scalar_lea.vmem [#allocation11], %s300
        // Predicated region
        $region53: #{tpu_custom_call.1} parent=39 // pred_check
          %p302 = pneg %p121
        $region54: #{tpu_custom_call.1} parent=39 // pred_check_branch
          %304 = sbr.rel (%p302) target = $region56
        $region55: #{tpu_custom_call.1} parent=39 // pred_region
          %305 = dma.done %s298, 128
        $region56: #{tpu_custom_call.1} parent=39 // pred_fallthru
          _
        %s306 = sand.u32 %s134, 1
        %s307 = scalar_lea.sflag [#allocation13], %s306
        %s308 = sand.u32 %s134, 1
        %s309 = smul.addr %s308, 8
        %s310 = scalar_lea.vmem [#allocation12], %s309
        // Predicated region
        $region57: #{tpu_custom_call.1} parent=39 // pred_check
          %p311 = pneg %p147
        $region58: #{tpu_custom_call.1} parent=39 // pred_check_branch
          %313 = sbr.rel (%p311) target = $region60
        $region59: #{tpu_custom_call.1} parent=39 // pred_region
          %314 = dma.done %s307, 128
        $region60: #{tpu_custom_call.1} parent=39 // pred_fallthru
          _
        %315 = sfence
        %p316 = pneg %p43
        %p317 = pneg %p40
        %s318 = sand.u32 %s56, 1
        %s319 = scalar_lea.sflag [#allocation5], %s318
        %s320 = sand.u32 %s56, 1
        %s321 = smul.addr %s320, 8
        %s322 = scalar_lea.vmem [#allocation8], %s321
        %p323 = pneg %p69
        %p324 = pneg %p66
        %s325 = sand.u32 %s27, 1
        %s326 = scalar_lea.sflag [#allocation10], %s325
        %s327 = sand.u32 %s82, 1
        %s328 = smul.addr %s327, 8
        %s329 = scalar_lea.vmem [#allocation9], %s328
        %p330 = pneg %p95
        %p331 = pneg %p92
        %s332 = sand.u32 %s27, 1
        %s333 = scalar_lea.sflag [#allocation10], %s332
        %s334 = sand.u32 %s108, 1
        %s335 = smul.addr %s334, 8
        %s336 = scalar_lea.vmem [#allocation11], %s335
        %p337 = pneg %p121
        %p338 = pneg %p118
        %s339 = sand.u32 %s134, 1
        %s340 = scalar_lea.sflag [#allocation13], %s339
        %s341 = sand.u32 %s134, 1
        %s342 = smul.addr %s341, 8
        %s343 = scalar_lea.vmem [#allocation12], %s342
        %p344 = pneg %p147
        %p345 = pneg %p144
        %p346 = pneg %p168
        %p347 = pneg %p165
        %p348 = scmp.eq.s32.totalorder %s27, 0
        // Predicated region
        $region61: #{tpu_custom_call.1} parent=39 // pred_check
          %p349 = pneg %p348
        $region62: #{tpu_custom_call.1} parent=39 // pred_check_branch
          %351 = sbr.rel (%p349) target = $region64
        $region63: #{tpu_custom_call.1} parent=39 // pred_region
          %vm352 = vcmask 0
          %353 = vst.msk [vmem:[#allocation2] sm:$0x1] %vm352, 0.0
          %354 = vst.msk [vmem:[#allocation3] sm:$0x1] %vm352, 0.0
        $region64: #{tpu_custom_call.1} parent=39 // pred_fallthru
          _
        %v355 = vld [vmem:[%s283] sm:$0xff]
        %v356 = vld [vmem:[%s292] sm:$0xff]
        %v357 = vld [vmem:[%s301] sm:$0xff]
        %v358 = vld [vmem:[%s310] sm:$0xff]
        %v359 = vsub.f32 %v357, %v358
        %v360 = vlaneseq
        %v361 = vshrl.u32 %v360, 7
        %s362 = smul.u32 %s27, 8
        %v363 = vstv %s362
        %v364 = vadd.s32 %v361, %v363
        %vm365 = vcmp.lt.s32.totalorder %v364, 20
        %v366 = vsel %vm365, %v355, 0.5
        %v367 = vsel %vm365, %v356, 0.0
        %v368 = vsel %vm365, %v359, 0.0
        %v369 = vlog2.pop %v366
        %v370 = vmul.f32 %v369, 0.6931472
        %v371 = vmax.f32 %v370, -100.0
        %v372 = vsub.f32 1.0, %v366
        %v373 = vlog2.pop %v372
        %v374 = vmul.f32 %v373, 0.6931472
        %v375 = vmax.f32 %v374, -100.0
        %v376 = vsub.f32 %v371, %v375
        %v377 = vmul.f32 %v367, %v376
        %v378 = vadd.f32 %v375, %v377
        %v379 = vsel %vm365, %v378, 0.0
        %v380 = vld [vmem:[#allocation2] sm:$0x1]
        %381 = vadd.xlane.f32.xlu0 %v379
        %v382 = vpop.xlane.xlu0 %381
        %v383 = vrot.slane %v382, 4
        %v384 = vadd.f32 %v382, %v383
        %v385 = vrot.slane %v384, 2
        %v386 = vadd.f32 %v384, %v385
        %v387 = vrot.slane %v386, 1
        %v388 = vadd.f32 %v386, %v387
        %s389 = vtos %v388
        %v390 = vstv %s389
        %v391 = vadd.f32 %v380, %v390
        %vm392 = vcmask 0
        %393 = vst.msk [vmem:[#allocation2] sm:$0x1] %vm392, %v391
        %v394 = vld [vmem:[#allocation3] sm:$0x1]
        %v395 = vmul.f32 %v368, %v368
        %396 = vadd.xlane.f32.xlu0 %v395
        %v397 = vpop.xlane.xlu0 %396
        %v398 = vrot.slane %v397, 4
        %v399 = vadd.f32 %v397, %v398
        %v400 = vrot.slane %v399, 2
        %v401 = vadd.f32 %v399, %v400
        %v402 = vrot.slane %v401, 1
        %v403 = vadd.f32 %v401, %v402
        %s404 = vtos %v403
        %v405 = vstv %s404
        %v406 = vadd.f32 %v394, %v405
        %407 = vst.msk [vmem:[#allocation3] sm:$0x1] %vm392, %v406
        %p408 = scmp.eq.s32.totalorder %s27, 2
        // Predicated region
        $region65: #{tpu_custom_call.1} parent=39 // pred_check
          %p409 = pneg %p408
        $region66: #{tpu_custom_call.1} parent=39 // pred_check_branch
          %411 = sbr.rel (%p409) target = $region68
        $region67: #{tpu_custom_call.1} parent=39 // pred_region
          %v412 = vld [vmem:[#allocation2] sm:$0x1]
          %v413 = vsub.f32 0.0, %v412
          %v414 = vmul.f32 %v413, 0.000390625
          %v415 = vld [vmem:[#allocation3] sm:$0x1]
          %v416 = vmul.f32 %v415, 0.000390625
          %s417 = sld [smem:[#allocation4]]
          %s418 = sld [smem:[#allocation4 + $0x1]]
          %s419 = ssub.f32 0.0, %s417
          %v420 = vstv %s419
          %v421 = vmul.f32 %v420, 1.442695
          %v422 = vpow.pop %v421
          %s423 = vtos %v422
          %v424 = vstv %s423
          %v425 = vmul.f32 %v424, %v414
          %v426 = vstv %s417
          %v427 = vadd.f32 %v425, %v426
          %s428 = ssub.f32 0.0, %s418
          %v429 = vstv %s428
          %v430 = vmul.f32 %v429, 1.442695
          %v431 = vpow.pop %v430
          %s432 = vtos %v431
          %v433 = vstv %s432
          %v434 = vmul.f32 %v433, %v416
          %v435 = vstv %s418
          %v436 = vadd.f32 %v434, %v435
          %v437 = vadd.f32 %v427, %v436
          %s438 = vtos %v437
          %s439 = scalar_lea.smem [#allocation14], 0
          %440 = sst [smem:[%s439]] %s438
        $region68: #{tpu_custom_call.1} parent=39 // pred_fallthru
          _
        // Predicated region
        $region69: #{tpu_custom_call.1} parent=39 // pred_check
          %p441 = pneg %p165
        $region70: #{tpu_custom_call.1} parent=39 // pred_check_branch
          %443 = sbr.rel (%p441) target = $region72
        $region71: #{tpu_custom_call.1} parent=39 // pred_region
          %s445 = ssub.s32 16, 16
          %446 = vsyncadd [#allocation7], %s445
          %449 = dma.smem_to_hbm [#allocation14], 16, %s5, [#allocation7]
        $region72: #{tpu_custom_call.1} parent=39 // pred_fallthru
          _
        // Predicated region
        $region73: #{tpu_custom_call.1} parent=39 // pred_check
          %p450 = pneg %p165
        $region74: #{tpu_custom_call.1} parent=39 // pred_check_branch
          %452 = sbr.rel (%p450) target = $region76
        $region75: #{tpu_custom_call.1} parent=39 // pred_region
          %453 = dma.done [#allocation7], 16
        $region76: #{tpu_custom_call.1} parent=39 // pred_fallthru
          _
        %454 = sfence
      $region40: #{tpu_custom_call.1} parent=5 // pred_fallthru
        _
      %p455 = scmp.le.s32.totalorder 2, %s22
      // Predicated region
      $region77: #{tpu_custom_call.1} parent=5 // pred_check
        %p456 = pneg %p455
      $region78: #{tpu_custom_call.1} parent=5 // pred_check_branch
        %458 = sbr.rel (%p456) target = $region80
      $region79: #{tpu_custom_call.1} parent=5 // pred_region
        %s459 = ssub.s32 %s22, 2
      $region80: #{tpu_custom_call.1} parent=5 // pred_fallthru
        _
    $region6: #{tpu_custom_call.1} parent=1 // loop_footer
      %s26 = sadd.s32 1, %s22
    $region7: #{tpu_custom_call.1} parent=1 // loop_footer_branch
      %21 = sbr.rel target = $region3
    $region8: #{tpu_custom_call.1} parent=1 // loop_exit
      _
    %460 = vsyncpa [#allocation5], 1
    %s461 = scalar_lea.sflag [#allocation5], 1
    %462 = vsyncpa %s461, 1
    %463 = vsyncpa [#allocation10], 1
    %s464 = scalar_lea.sflag [#allocation10], 1
    %465 = vsyncpa %s464, 1
    %466 = vsyncpa [#allocation13], 1
    %s467 = scalar_lea.sflag [#allocation13], 1
    %468 = vsyncpa %s467, 1
    %469 = vsyncpa [#allocation6], 1
    %s470 = scalar_lea.sflag [#allocation6], 1
    %471 = vsyncpa %s470, 1
    %472 = vsyncpa [#allocation7], 1
    %s473 = scalar_lea.sflag [#allocation7], 1
    %474 = vsyncpa %s473, 1

</llo_original>
